<compile_context>
chip_gen: v5e
topology: v5e:2x2
jax: 0.10.0
libtpu: 0.0.40
codegen_flags: <defaults>
</compile_context>

<pallas_src>
import functools
import math

import jax
import jax.numpy as jnp
from jax.experimental import pallas as pl
from jax.experimental.pallas import tpu as pltpu

_VMEM_LIMIT = 32 * 1024 * 1024  # safe on v5e/v6e (128 MiB) and v7x (64 MiB/TC)


# ----------------------------------------------------------------------------
# Tiled matmul.  Fast path when K fits in one block: no accumulator scratch,
# no pl.when branches, 2-D grid.
# ----------------------------------------------------------------------------
def _matmul_single_k_kernel(a_ref, b_ref, o_ref):
    o_ref[...] = jnp.dot(a_ref[...], b_ref[...],
                         preferred_element_type=jnp.float32).astype(o_ref.dtype)


def _matmul_acc_kernel(a_ref, b_ref, o_ref, acc_ref):
    @pl.when(pl.program_id(2) == 0)
    def _():
        acc_ref[...] = jnp.zeros_like(acc_ref)

    acc_ref[...] += jnp.dot(a_ref[...], b_ref[...],
                            preferred_element_type=jnp.float32)

    @pl.when(pl.program_id(2) == pl.num_programs(2) - 1)
    def _():
        o_ref[...] = acc_ref[...].astype(o_ref.dtype)


def pallas_matmul(a, b, out_dtype=None, tm=64, tn=256, tk=512):
    """a [M, K] @ b [K, N] -> [M, N], tiled + pipelined."""
    M, K = a.shape
    K2, N = b.shape
    assert K == K2
    tm, tn, tk = min(tm, M), min(tn, N), min(tk, K)
    assert M % tm == 0 and N % tn == 0 and K % tk == 0
    out_dtype = out_dtype or a.dtype

    bytes_accessed = int(a.size * a.dtype.itemsize + b.size * b.dtype.itemsize
                         + M * N * jnp.dtype(out_dtype).itemsize)
    cost = pl.CostEstimate(flops=2 * M * N * K, transcendentals=0,
                           bytes_accessed=bytes_accessed)

    if K == tk:
        # Single K step: skip the accumulator scratch and the pl.when branches.
        return pl.pallas_call(
            _matmul_single_k_kernel,
            out_shape=jax.ShapeDtypeStruct((M, N), out_dtype),
            grid=(M // tm, N // tn),
            in_specs=[pl.BlockSpec((tm, tk), lambda i, j: (i, 0)),
                      pl.BlockSpec((tk, tn), lambda i, j: (0, j))],
            out_specs=pl.BlockSpec((tm, tn), lambda i, j: (i, j)),
            compiler_params=pltpu.CompilerParams(
                dimension_semantics=("parallel", "parallel"),
                vmem_limit_bytes=_VMEM_LIMIT),
            cost_estimate=cost,
        )(a, b)

    return pl.pallas_call(
        _matmul_acc_kernel,
        out_shape=jax.ShapeDtypeStruct((M, N), out_dtype),
        grid=(M // tm, N // tn, K // tk),
        in_specs=[pl.BlockSpec((tm, tk), lambda i, j, k: (i, k)),
                  pl.BlockSpec((tk, tn), lambda i, j, k: (k, j))],
        out_specs=pl.BlockSpec((tm, tn), lambda i, j, k: (i, j)),
        scratch_shapes=[pltpu.VMEM((tm, tn), jnp.float32)],
        compiler_params=pltpu.CompilerParams(
            dimension_semantics=("parallel", "parallel", "arbitrary"),
            vmem_limit_bytes=_VMEM_LIMIT),
        cost_estimate=cost,
    )(a, b)


# ----------------------------------------------------------------------------
# Fused out-projection (+ residual) + LM head: one pallas_call, h2d stays in a
# VMEM scratch tile (computed once per row tile at vocab-step 0).
# ----------------------------------------------------------------------------
def _outproj_lmhead_kernel(attn_ref, x_ref, wo_ref, wlm_ref, o_ref, h_ref):
    @pl.when(pl.program_id(1) == 0)
    def _():
        h = jnp.dot(attn_ref[...], wo_ref[...],
                    preferred_element_type=jnp.float32)
        h_ref[...] = (h + x_ref[...].astype(jnp.float32)).astype(h_ref.dtype)

    o_ref[...] = jnp.dot(h_ref[...], wlm_ref[...],
                         preferred_element_type=jnp.float32).astype(o_ref.dtype)


def pallas_outproj_lmhead(attn2d, x2d, wo, w_lm, *, tm=64, tn=512,
                          out_dtype=jnp.float32):
    """((attn2d @ wo) + x2d) @ w_lm -> [M, V] logits, without writing h to HBM."""
    M, hidden = attn2d.shape
    V = w_lm.shape[1]
    assert wo.shape == (hidden, hidden) and w_lm.shape[0] == hidden
    tm, tn = min(tm, M), min(tn, V)
    assert M % tm == 0 and V % tn == 0

    flops = 2 * M * hidden * hidden + 2 * M * hidden * V
    bytes_accessed = int(attn2d.size * attn2d.dtype.itemsize
                         + x2d.size * x2d.dtype.itemsize
                         + wo.size * wo.dtype.itemsize
                         + w_lm.size * w_lm.dtype.itemsize
                         + M * V * jnp.dtype(out_dtype).itemsize)
    cost = pl.CostEstimate(flops=flops, transcendentals=0,
                           bytes_accessed=bytes_accessed)

    return pl.pallas_call(
        _outproj_lmhead_kernel,
        out_shape=jax.ShapeDtypeStruct((M, V), out_dtype),
        grid=(M // tm, V // tn),
        in_specs=[
            pl.BlockSpec((tm, hidden), lambda i, j: (i, 0)),      # attn tile
            pl.BlockSpec((tm, hidden), lambda i, j: (i, 0)),      # residual x
            pl.BlockSpec((hidden, hidden), lambda i, j: (0, 0)),  # wo (resident)
            pl.BlockSpec((hidden, tn), lambda i, j: (0, j)),      # w_lm tile
        ],
        out_specs=pl.BlockSpec((tm, tn), lambda i, j: (i, j)),
        scratch_shapes=[pltpu.VMEM((tm, hidden), attn2d.dtype)],
        compiler_params=pltpu.CompilerParams(
            # vocab axis must be sequential so the j==0 scratch init precedes use
            dimension_semantics=("parallel", "arbitrary"),
            vmem_limit_bytes=_VMEM_LIMIT),
        cost_estimate=cost,
    )(attn2d, x2d, wo, w_lm)


# ----------------------------------------------------------------------------
# Prefix-causal attention: flash-style online softmax over tiled prefix KV,
# causally-masked new tokens folded in on the last KV step.
#   Q / new-K / new-V are head-blocks of the fused [B*S, 3*hidden] QKV slab.
#   Prefix K/V stay batch-1 in HBM and are broadcast via the index_map.
# ----------------------------------------------------------------------------
def _prefix_attn_kernel(q_ref, kp_ref, vp_ref, kn_ref, vn_ref, o_ref,
                        m_sc, l_sc, acc_sc):
    kp = pl.program_id(2)

    @pl.when(kp == 0)
    def _():
        m_sc[...] = jnp.full_like(m_sc, -1e30)
        l_sc[...] = jnp.zeros_like(l_sc)
        acc_sc[...] = jnp.zeros_like(acc_sc)

    q = q_ref[...]                          # (S, D) bf16; 1/sqrt(D) folded into wqkv
    dn = (((1,), (1,)), ((), ()))           # contract head_dim, no explicit transpose

    # --- online softmax over this (unmasked) prefix-KV tile ---
    s_p = jax.lax.dot_general(q, kp_ref[...], dn,
                              preferred_element_type=jnp.float32)       # (S, TP)
    m_new = jnp.maximum(m_sc[...], jnp.max(s_p, axis=-1, keepdims=True))
    alpha = jnp.exp(m_sc[...] - m_new)
    p_p = jnp.exp(s_p - m_new)
    l_sc[...] = alpha * l_sc[...] + jnp.sum(p_p, axis=-1, keepdims=True)
    acc_sc[...] = alpha * acc_sc[...] + jnp.dot(
        p_p.astype(vp_ref.dtype), vp_ref[...],
        preferred_element_type=jnp.float32)
    m_sc[...] = m_new

    # --- last KV step: fold in causally-masked new tokens and finalize ---
    @pl.when(kp == pl.num_programs(2) - 1)
    def _():
        s_n = jax.lax.dot_general(q, kn_ref[...], dn,
                                  preferred_element_type=jnp.float32)   # (S, S)
        S = s_n.shape[0]
        qi = jax.lax.broadcasted_iota(jnp.int32, (S, S), 0)
        kj = jax.lax.broadcasted_iota(jnp.int32, (S, S), 1)
        s_n = jnp.where(kj <= qi, s_n, jnp.float32(-1e30))  # scores stay f32
        m_fin = jnp.maximum(m_sc[...], jnp.max(s_n, axis=-1, keepdims=True))
        a2 = jnp.exp(m_sc[...] - m_fin)
        p_n = jnp.exp(s_n - m_fin)
        l = a2 * l_sc[...] + jnp.sum(p_n, axis=-1, keepdims=True)
        acc = a2 * acc_sc[...] + jnp.dot(
            p_n.astype(vn_ref.dtype), vn_ref[...],
            preferred_element_type=jnp.float32)
        o_ref[...] = (acc * pl.reciprocal(l, approx=True)).astype(o_ref.dtype)


def pallas_prefix_attention(qkv2d, prefix_k, prefix_v, *, B, S, H, D,
                            kv_tile=512):
    """qkv2d: [B*S, 3*H*D] fused QKV; prefix_k/v: [Bp, H, P, D], Bp in {1, B}.

    Returns attention output in [B*S, H*D] layout (no transposes)."""
    hidden = H * D
    P = prefix_k.shape[2]
    TP = min(kv_tile, P)
    assert P % TP == 0
    n_kp = P // TP

    # Zero-copy batch-1 prefix broadcast via index_map (no jnp.repeat in HBM).
    if prefix_k.shape[0] == 1:
        kv_map = lambda h, b, kp: (0, h, kp, 0)
    else:
        kv_map = lambda h, b, kp: (b, h, kp, 0)

    q_map = lambda h, b, kp: (b, h)           # Q region:     cols [h*D, (h+1)*D)
    kn_map = lambda h, b, kp: (b, H + h)      # new-K region: offset by hidden
    vn_map = lambda h, b, kp: (b, 2 * H + h)  # new-V region: offset by 2*hidden

    cost = pl.CostEstimate(
        flops=4 * B * H * S * (P + S) * D,
        transcendentals=B * H * S * (P + S),
        bytes_accessed=int(qkv2d.size * qkv2d.dtype.itemsize
                           + 2 * prefix_k.size * prefix_k.dtype.itemsize
                           + B * S * hidden * qkv2d.dtype.itemsize))

    return pl.pallas_call(
        _prefix_attn_kernel,
        out_shape=jax.ShapeDtypeStruct((B * S, hidden), qkv2d.dtype),
        # Batch innermost of the parallel axes: with a batch-1 prefix the
        # (0, h, kp, 0) prefix block index is constant across consecutive
        # steps, so Pallas skips the prefix re-DMA. KV axis is the innermost
        # (sequential) accumulator axis.
        grid=(H, B, n_kp),
        in_specs=[
            pl.BlockSpec((S, D), q_map),                                  # Q
            pl.BlockSpec((pl.Squeezed(), pl.Squeezed(), TP, D), kv_map),  # prefix K
            pl.BlockSpec((pl.Squeezed(), pl.Squeezed(), TP, D), kv_map),  # prefix V
            pl.BlockSpec((S, D), kn_map),                                 # new K
            pl.BlockSpec((S, D), vn_map),                                 # new V
        ],
        out_specs=pl.BlockSpec((S, D), q_map),
        scratch_shapes=[pltpu.VMEM((S, 1), jnp.float32),   # m
                        pltpu.VMEM((S, 1), jnp.float32),   # l
                        pltpu.VMEM((S, D), jnp.float32)],  # acc
        compiler_params=pltpu.CompilerParams(
            dimension_semantics=("parallel", "parallel", "arbitrary"),
            vmem_limit_bytes=_VMEM_LIMIT),
        cost_estimate=cost,
    )(qkv2d, prefix_k, prefix_v, qkv2d, qkv2d)


# ----------------------------------------------------------------------------
# WrappedPrefixCausalLM (synthetic model + prefix KV cache)
# ----------------------------------------------------------------------------
def kv_cache_repeat(key_values, bs):
    """bs 1 -> bs n (torch.repeat_interleave(bs, dim=0) on batch-1 tensors).

    Logical repeat only: materializing B copies of the prefix KV in HBM is pure
    wasted bandwidth, so tensors are returned unchanged and the attention
    kernel broadcasts the batch-1 prefix via its BlockSpec index_map."""
    if key_values is None:
        return None
    out = {}
    for layer_index in range(len(key_values)):
        k, v = key_values[layer_index]
        out[layer_index] = (k, v)
    return out


class WrappedPrefixCausalLM:
    def __init__(self, params, prefixed_key_values, num_heads, head_dim):
        self.params = params
        self.prefixed_key_values = prefixed_key_values
        self.bs_prefixed_key_values = prefixed_key_values
        self.num_heads = num_heads
        self.head_dim = head_dim
        hidden = num_heads * head_dim
        # Fold the 1/sqrt(D) softmax scale into the Q columns of wqkv once
        # (one-time weight preprocessing; removes the per-step in-kernel scale).
        scale = 1.0 / math.sqrt(head_dim)
        wqkv = params["wqkv"]
        q_cols = (wqkv[:, :hidden].astype(jnp.float32) * scale).astype(wqkv.dtype)
        self._wqkv_scaled = jnp.concatenate([q_cols, wqkv[:, hidden:]], axis=1)

    def _model_forward(self, input_ids, past_key_values):
        p = self.params
        B, S = input_ids.shape
        H, D = self.num_heads, self.head_dim
        hidden = H * D

        # TODO(synk): move the embedding gather into the QKV kernel via
        # scalar-prefetched input_ids + pl.Element row gather.
        x2d = p["wte"][input_ids].reshape(B * S, hidden)          # [B*S, hidden] bf16

        # Fused Q/K/V projection: one tiled matmul, lane-dense 3*hidden output.
        qkv2d = pallas_matmul(x2d, self._wqkv_scaled)             # [B*S, 3*hidden]

        # Prefix-causal attention; prefix KV broadcast, no concat, no transposes.
        pk, pv = past_key_values[0]                               # [1 or B, H, P, D]
        attn2d = pallas_prefix_attention(qkv2d, pk, pv, B=B, S=S, H=H, D=D)

        # Fused out-projection + residual + LM head (h2d never leaves VMEM).
        logits = pallas_outproj_lmhead(attn2d, x2d, p["wo"], p["w_lm"])
        return logits.reshape(B, S, -1)

    def forward(self, input_ids, past_key_values=None):
        if past_key_values is None:
            bs = input_ids.shape[0]
            self.bs_prefixed_key_values = kv_cache_repeat(
                self.prefixed_key_values, bs)
            past_key_values = self.bs_prefixed_key_values
        return self._model_forward(input_ids, past_key_values)


# ----------------------------------------------------------------------------
# Pure-JAX f32 reference (for a correctness sanity check)
# ----------------------------------------------------------------------------
def reference_forward(params, input_ids, prefixed_key_values, num_heads, head_dim):
    B, S = input_ids.shape
    H, D = num_heads, head_dim
    hidden = H * D
    f32 = jnp.float32

    wte = params["wte"].astype(f32)
    wqkv = params["wqkv"].astype(f32)
    wo = params["wo"].astype(f32)
    w_lm = params["w_lm"].astype(f32)
    pk, pv = prefixed_key_values[0]
    pk = jnp.repeat(pk.astype(f32), B, axis=0)
    pv = jnp.repeat(pv.astype(f32), B, axis=0)
    P = pk.shape[2]

    x2d = wte[input_ids].reshape(B * S, hidden)
    qkv = x2d @ wqkv
    q = qkv[:, :hidden].reshape(B, S, H, D).transpose(0, 2, 1, 3)
    k_new = qkv[:, hidden:2 * hidden].reshape(B, S, H, D).transpose(0, 2, 1, 3)
    v_new = qkv[:, 2 * hidden:].reshape(B, S, H, D).transpose(0, 2, 1, 3)
    k = jnp.concatenate([pk, k_new], axis=2)
    v = jnp.concatenate([pv, v_new], axis=2)

    scores = jnp.einsum("bhsd,bhtd->bhst", q, k) / jnp.sqrt(jnp.float32(D))
    qi = jnp.arange(S)[:, None]
    kj = jnp.arange(P + S)[None, :]
    mask = kj <= (qi + P)
    scores = jnp.where(mask[None, None], scores, -1e30)
    probs = jax.nn.softmax(scores, axis=-1)
    attn = jnp.einsum("bhst,bhtd->bhsd", probs, v)
    attn2d = attn.transpose(0, 2, 1, 3).reshape(B * S, hidden)
    h2d = x2d + attn2d @ wo
    return (h2d @ w_lm).reshape(B, S, -1)


# ----------------------------------------------------------------------------
# Main
# ----------------------------------------------------------------------------
if __name__ == "__main__":
    # Lane-dense dims: head_dim=128, hidden=256, vocab=512, prefix=128, S=64.
    B, S = 2, 64
    num_heads, head_dim = 2, 128
    hidden = num_heads * head_dim        # 256
    vocab = 512
    prefix_len = 128

    key = jax.random.PRNGKey(0)
    ks = jax.random.split(key, 8)

    def init(k, shape, std):
        return (jax.random.normal(k, shape, jnp.float32) * std).astype(jnp.bfloat16)

    params = {
        "wte": init(ks[0], (vocab, hidden), 1.0),
        "wqkv": init(ks[1], (hidden, 3 * hidden), hidden ** -0.5),
        "wo": init(ks[2], (hidden, hidden), hidden ** -0.5),
        "w_lm": init(ks[3], (hidden, vocab), hidden ** -0.5),
    }

    # Prefix KV cache for one layer, batch=1 (HF convention [1, H, P, D]).
    prefixed_key_values = {
        0: (
            init(ks[4], (1, num_heads, prefix_len, head_dim), 1.0),
            init(ks[5], (1, num_heads, prefix_len, head_dim), 1.0),
        )
    }

    input_ids = jax.random.randint(ks[6], (B, S), 0, vocab, dtype=jnp.int32)

    model = WrappedPrefixCausalLM(params, prefixed_key_values, num_heads, head_dim)
    logits = model.forward(input_ids)   # past_key_values=None -> kv_cache_repeat path
    logits = jax.block_until_ready(logits)

    ref = reference_forward(params, input_ids, prefixed_key_values,
                            num_heads, head_dim)
    assert logits.shape == (B, S, vocab)
    rel_err = float(jnp.max(jnp.abs(logits - ref)) / jnp.max(jnp.abs(ref)))
    assert rel_err < 8e-2, f"relative error too large: {rel_err}"

    print("KERNEL_OK")
</pallas_src>

<mosaic_0001>
module attributes {stable_mosaic.version = 11 : i64} {
  func.func @_matmul_single_k_kernel(%arg0: i32, %arg1: i32, %arg2: memref<64x256xbf16, #tpu.memory_space<vmem>>, %arg3: memref<256x256xbf16, #tpu.memory_space<vmem>>, %arg4: memref<64x256xbf16, #tpu.memory_space<vmem>>) attributes {dimension_semantics = [#tpu.dimension_semantics<parallel>, #tpu.dimension_semantics<parallel>], iteration_bounds = array<i64: 2, 3>, scalar_prefetch = 0 : i64, scratch_operands = 0 : i64, tpu.core_type = #tpu.core_type<tc>, window_params = [{transform_indices = @transform_0, window_bounds = array<i64: 64, 256>}, {transform_indices = @transform_1, window_bounds = array<i64: 256, 256>}, {transform_indices = @transform_2, window_bounds = array<i64: 64, 256>}]} {
    %c0 = arith.constant 0 : index
    %c0_0 = arith.constant 0 : index
    %0 = vector.load %arg2[%c0, %c0_0] : memref<64x256xbf16, #tpu.memory_space<vmem>>, vector<64x256xbf16>
    %c0_1 = arith.constant 0 : index
    %c0_2 = arith.constant 0 : index
    %1 = vector.load %arg3[%c0_1, %c0_2] : memref<256x256xbf16, #tpu.memory_space<vmem>>, vector<256x256xbf16>
    %cst = arith.constant dense<0.000000e+00> : vector<64x256xf32>
    %2 = tpu.matmul %0, %1, %cst {dimension_numbers = #tpu.dot_dimension_numbers<[1], [0], [0], [1], [0, 0, 1, 1], [], []>} : vector<64x256xbf16>, vector<256x256xbf16>, vector<64x256xf32> -> vector<64x256xf32>
    %3 = arith.truncf %2 : vector<64x256xf32> to vector<64x256xbf16>
    %c0_3 = arith.constant 0 : index
    %c0_4 = arith.constant 0 : index
    %4 = vector.load %arg4[%c0_3, %c0_4] : memref<64x256xbf16, #tpu.memory_space<vmem>>, vector<64x256xbf16>
    tpu.vector_store %arg4[%c0_3, %c0_4], %3 {strides = array<i32>} : memref<64x256xbf16, #tpu.memory_space<vmem>>, vector<64x256xbf16>,
    return
  }
  func.func @transform_0(%arg0: i32, %arg1: i32) -> (i32, i32) {
    %c0_i32 = arith.constant 0 : i32
    %c0_i32_0 = arith.constant 0 : i32
    return %arg0, %c0_i32 : i32, i32
  }
  func.func @transform_1(%arg0: i32, %arg1: i32) -> (i32, i32) {
    %c0_i32 = arith.constant 0 : i32
    %c0_i32_0 = arith.constant 0 : i32
    return %c0_i32, %arg1 : i32, i32
  }
  func.func @transform_2(%arg0: i32, %arg1: i32) -> (i32, i32) {
    %c0_i32 = arith.constant 0 : i32
    return %arg0, %arg1 : i32, i32
  }
}

</mosaic_0001>

<llo_original>
// kernel: tpu_custom_call.1
$region0: #{tpu_custom_call.1}
  #allocation0 [shape = 'u32[]', space=smem, size = 0x4, offset = 0x4, fixed_abs, tag = 'smem constant byte address 0x4 - core index']
  #allocation1 [shape = 'u32[72,128]{1,0:T(1,128)}', space=vmem, size = 0x9000, scoped, tag = 'internal scratch']
  %s0 = inlined_call_operand.hbm [shape: bf16[128,256], index: 0, kind: input, shape index: {}]
  %s1 = inlined_call_operand.hbm [shape: bf16[256,768], index: 1, kind: input, shape index: {}]
  %s2 = inlined_call_operand.hbm [shape: bf16[128,768], index: 2, kind: output, shape index: {}]
  %s3 = sld [smem:[#allocation0]]
  $region49: #{tpu_custom_call.1} parent=0
    _
  %s5 = ssub.s32 1, %s3
  %s6 = scalar_select 0, %s5, %s3
  $region1: #{tpu_custom_call.1} parent=0
    #allocation2 [shape = 'u8[65536]{0}', space=vmem, size = 0x10000, scoped, tag = 'input window, operand 0']
    #allocation3 [shape = 's32[2]{0}', space=sflag, size = 0x8, scoped, tag = 'scoped memory for tpu_custom_call.1']
    #allocation4 [shape = 's32[2]{0}', space=sflag, size = 0x8, scoped, tag = 'scoped memory for tpu_custom_call.1']
    #allocation5 [shape = 'u8[262144]{0}', space=vmem, size = 0x40000, scoped, tag = 'input window, operand 1']
    #allocation6 [shape = 's32[2]{0}', space=sflag, size = 0x8, scoped, tag = 'scoped memory for tpu_custom_call.1']
    #allocation7 [shape = 'u8[65536]{0}', space=vmem, size = 0x10000, scoped, tag = 'output window, operand 0']
    %7 = vsyncpa [#allocation3], 0
    %s8 = scalar_lea.sflag [#allocation3], 1
    %9 = vsyncpa %s8, 0
    %10 = vsyncpa [#allocation6], 0
    %s11 = scalar_lea.sflag [#allocation6], 1
    %12 = vsyncpa %s11, 0
    %13 = vsyncpa [#allocation4], 0
    %s14 = scalar_lea.sflag [#allocation4], 1
    %15 = vsyncpa %s14, 0
    loop: start=0, step=1, limit=8
    $region2: #{tpu_custom_call.1} parent=1 // loop_pre_header
      _
    $region3: #{tpu_custom_call.1} parent=1 // loop_header
      %s17 = sphi 0, %s21
      %p18 = scmp.ge.s32.totalorder %s17, 8
      %s24 = sphi 0, %s36
      %s25 = sphi 0, %s32
      %s26 = sphi 0, %s24
      %s27 = sphi 0, %s25
      %s28 = sphi 0, %s26
      %s29 = sphi 0, %s27
      %s39 = sphi 0, %s41
      %s42 = sphi 0, %s39
      %s43 = sphi 0, %s42
      %s59 = sphi 0, %s43
      %s65 = sphi 0, %s67
      %s68 = sphi 0, %s65
      %s69 = sphi 0, %s68
      %s85 = sphi 0, %s69
      %s93 = sphi 0, %s95
      %s96 = sphi 0, %s93
      %s97 = sphi 0, %s96
      %s113 = sphi 0, %s97
    $region4: #{tpu_custom_call.1} parent=1 // loop_header_branch
      %20 = sbr.rel (%p18) target = $region8
    $region5: #{tpu_custom_call.1} parent=1 // loop_body
      %s22 = ssub.s32 %s17, 1
      %s23 = ssub.s32 %s17, 2
      %s30 = sadd.s32 1, %s25
      %p31 = scmp.ge.s32.totalorder %s30, 3
      %s32 = scalar_select %p31, 0, %s30
      %s33 = sadd.s32 1, %s24
      %s34 = scalar_select %p31, %s33, %s24
      %p35 = scmp.ge.s32.totalorder %s34, 2
      %s36 = scalar_select %p35, 0, %s34
      %s37 = ssub.s32 %s24, %s36
      %p38 = scmp.eq.s32.totalorder %s37, 0
      %s40 = sadd.s32 %s39, 1
      %s41 = scalar_select %p38, %s39, %s40
      %p44 = pneg %p38
      %p45 = scmp.eq.s32.totalorder %s17, 5
      %p46 = por %p44, %p45
      %p47 = scmp.ne.s32.totalorder %s39, %s42
      %p48 = scmp.eq.s32.totalorder %s17, 0
      %p49 = por %p47, %p48
      %p50 = scmp.ne.s32.totalorder %s39, %s42
      %p51 = scmp.eq.s32.totalorder %s22, 5
      %p52 = por %p50, %p51
      %p53 = scmp.ne.s32.totalorder %s42, %s43
      %p54 = scmp.eq.s32.totalorder %s22, 0
      %p55 = por %p53, %p54
      %p56 = scmp.ne.s32.totalorder %s42, %s43
      %p57 = scmp.eq.s32.totalorder %s23, 5
      %p58 = por %p56, %p57
      %p60 = scmp.ne.s32.totalorder %s43, %s59
      %p61 = scmp.eq.s32.totalorder %s23, 0
      %p62 = por %p60, %p61
      %s63 = ssub.s32 %s25, %s32
      %p64 = scmp.eq.s32.totalorder %s63, 0
      %s66 = sadd.s32 %s65, 1
      %s67 = scalar_select %p64, %s65, %s66
      %p70 = pneg %p64
      %p71 = scmp.eq.s32.totalorder %s17, 5
      %p72 = por %p70, %p71
      %p73 = scmp.ne.s32.totalorder %s65, %s68
      %p74 = scmp.eq.s32.totalorder %s17, 0
      %p75 = por %p73, %p74
      %p76 = scmp.ne.s32.totalorder %s65, %s68
      %p77 = scmp.eq.s32.totalorder %s22, 5
      %p78 = por %p76, %p77
      %p79 = scmp.ne.s32.totalorder %s68, %s69
      %p80 = scmp.eq.s32.totalorder %s22, 0
      %p81 = por %p79, %p80
      %p82 = scmp.ne.s32.totalorder %s68, %s69
      %p83 = scmp.eq.s32.totalorder %s23, 5
      %p84 = por %p82, %p83
      %p86 = scmp.ne.s32.totalorder %s69, %s85
      %p87 = scmp.eq.s32.totalorder %s23, 0
      %p88 = por %p86, %p87
      %s89 = ssub.s32 %s24, %s36
      %s90 = ssub.s32 %s25, %s32
      %s91 = sor.u32 %s89, %s90
      %p92 = scmp.eq.s32.totalorder %s91, 0
      %s94 = sadd.s32 %s93, 1
      %s95 = scalar_select %p92, %s93, %s94
      %p98 = pneg %p92
      %p99 = scmp.eq.s32.totalorder %s17, 5
      %p100 = por %p98, %p99
      %p101 = scmp.ne.s32.totalorder %s93, %s96
      %p102 = scmp.eq.s32.totalorder %s17, 0
      %p103 = por %p101, %p102
      %p104 = scmp.ne.s32.totalorder %s93, %s96
      %p105 = scmp.eq.s32.totalorder %s22, 5
      %p106 = por %p104, %p105
      %p107 = scmp.ne.s32.totalorder %s96, %s97
      %p108 = scmp.eq.s32.totalorder %s22, 0
      %p109 = por %p107, %p108
      %p110 = scmp.ne.s32.totalorder %s96, %s97
      %p111 = scmp.eq.s32.totalorder %s23, 5
      %p112 = por %p110, %p111
      %p114 = scmp.ne.s32.totalorder %s97, %s113
      %p115 = scmp.eq.s32.totalorder %s23, 0
      %p116 = por %p114, %p115
      %p117 = scmp.le.s32.totalorder 1, %s17
      %p118 = scmp.lt.s32.totalorder %s17, 7
      %p119 = pnand %p117, %p118
      %p120 = pneg %p119
      // Predicated region
      $region9: #{tpu_custom_call.1} parent=5 // pred_check
        _
      $region10: #{tpu_custom_call.1} parent=5 // pred_check_branch
        %122 = sbr.rel (%p119) target = $region12
      $region11: #{tpu_custom_call.1} parent=5 // pred_region
        %s123 = ssub.s32 %s17, 1
      $region12: #{tpu_custom_call.1} parent=5 // pred_fallthru
        _
      %p124 = scmp.lt.s32.totalorder %s17, 6
      // Predicated region
      $region13: #{tpu_custom_call.1} parent=5 // pred_check
        %p125 = pneg %p124
      $region14: #{tpu_custom_call.1} parent=5 // pred_check_branch
        %127 = sbr.rel (%p125) target = $region16
      $region15: #{tpu_custom_call.1} parent=5 // pred_region
        // Predicated region
        $region17: #{tpu_custom_call.1} parent=15 // pred_check
          %p128 = pneg %p49
        $region18: #{tpu_custom_call.1} parent=15 // pred_check_branch
          %130 = sbr.rel (%p128) target = $region20
        $region19: #{tpu_custom_call.1} parent=15 // pred_region
          %s131 = sand.u32 %s39, 1
          %s132 = scalar_lea.sflag [#allocation3], %s131
          %s133 = sand.u32 %s39, 1
          %s134 = smul.addr %s133, 64
          %s135 = scalar_lea.vmem [#allocation2], %s134
          %s136 = smul.u32 8, %s24
          %138 = vsyncadd %s132, 0
          %s139 = smul.addr %s136, 2
          %s140 = smul.addr %s139, 4
          %s141 = scalar_lea.hbm %s0, %s140
          %s142 = sshll.u32 %s141, 4
          %s143 = int_to_ptr.hbm [resolvable:$true] %s142
          %s144 = sshll.u32 %s135, 4
          %s145 = int_to_ptr.vmem [resolvable:$true] %s144
          %150 = dma.hbm_to_vmem [thread:$0]  %s143, 1024, %s145, %s132, 128, 128, 8
        $region20: #{tpu_custom_call.1} parent=15 // pred_fallthru
          _
        // Predicated region
        $region21: #{tpu_custom_call.1} parent=15 // pred_check
          %p151 = pneg %p75
        $region22: #{tpu_custom_call.1} parent=15 // pred_check_branch
          %153 = sbr.rel (%p151) target = $region24
        $region23: #{tpu_custom_call.1} parent=15 // pred_region
          %s154 = sand.u32 %s65, 1
          %s155 = scalar_lea.sflag [#allocation6], %s154
          %s156 = sand.u32 %s65, 1
          %s157 = smul.addr %s156, 256
          %s158 = scalar_lea.vmem [#allocation5], %s157
          %s159 = smul.u32 2, %s25
          %161 = vsyncadd %s155, 0
          %s162 = smul.addr %s159, 4
          %s163 = scalar_lea.hbm %s1, %s162
          %s164 = sshll.u32 %s163, 4
          %s165 = int_to_ptr.hbm [resolvable:$true] %s164
          %s166 = sshll.u32 %s158, 4
          %s167 = int_to_ptr.vmem [resolvable:$true] %s166
          %172 = dma.hbm_to_vmem [thread:$0]  %s165, 4096, %s167, %s155, 384, 128, 8
        $region24: #{tpu_custom_call.1} parent=15 // pred_fallthru
          _
      $region16: #{tpu_custom_call.1} parent=5 // pred_fallthru
        _
      %p173 = scmp.le.s32.totalorder 1, %s17
      %p174 = scmp.lt.s32.totalorder %s17, 7
      %p175 = pnand %p173, %p174
      %p176 = pneg %p175
      // Predicated region
      $region25: #{tpu_custom_call.1} parent=5 // pred_check
        _
      $region26: #{tpu_custom_call.1} parent=5 // pred_check_branch
        %178 = sbr.rel (%p175) target = $region28
      $region27: #{tpu_custom_call.1} parent=5 // pred_region
        %s179 = ssub.s32 %s17, 1
        %s180 = sand.u32 %s42, 1
        %s181 = scalar_lea.sflag [#allocation3], %s180
        %s182 = sand.u32 %s42, 1
        %s183 = smul.addr %s182, 64
        %s184 = scalar_lea.vmem [#allocation2], %s183
        // Predicated region
        $region29: #{tpu_custom_call.1} parent=27 // pred_check
          %p185 = pneg %p55
        $region30: #{tpu_custom_call.1} parent=27 // pred_check_branch
          %187 = sbr.rel (%p185) target = $region32
        $region31: #{tpu_custom_call.1} parent=27 // pred_region
          %189 = dma.done %s181, 1024
        $region32: #{tpu_custom_call.1} parent=27 // pred_fallthru
          _
        %s190 = sand.u32 %s68, 1
        %s191 = scalar_lea.sflag [#allocation6], %s190
        %s192 = sand.u32 %s68, 1
        %s193 = smul.addr %s192, 256
        %s194 = scalar_lea.vmem [#allocation5], %s193
        // Predicated region
        $region33: #{tpu_custom_call.1} parent=27 // pred_check
          %p195 = pneg %p81
        $region34: #{tpu_custom_call.1} parent=27 // pred_check_branch
          %197 = sbr.rel (%p195) target = $region36
        $region35: #{tpu_custom_call.1} parent=27 // pred_region
          %199 = dma.done %s191, 4096
        $region36: #{tpu_custom_call.1} parent=27 // pred_fallthru
          _
        %s200 = sand.u32 %s42, 1
        %s201 = scalar_lea.sflag [#allocation3], %s200
        %s202 = sand.u32 %s42, 1
        %s203 = smul.addr %s202, 64
        %s204 = scalar_lea.vmem [#allocation2], %s203
        %p205 = pneg %p55
        %p206 = pneg %p52
        %s207 = sand.u32 %s68, 1
        %s208 = scalar_lea.sflag [#allocation6], %s207
        %s209 = sand.u32 %s68, 1
        %s210 = smul.addr %s209, 256
        %s211 = scalar_lea.vmem [#allocation5], %s210
        %p212 = pneg %p81
        %p213 = pneg %p78
        %p214 = pneg %p109
        %p215 = pneg %p106
        %s216 = sand.u32 %s96, 1
        %s217 = scalar_lea.sflag [#allocation4], %s216
        %s218 = sand.u32 %s96, 1
        %s219 = smul.addr %s218, 64
        %s220 = scalar_lea.vmem [#allocation7], %s219
        %s221 = smul.u32 8, %s26
        %s222 = smul.u32 2, %s27
        %s223 = smul.u32 8, %s26
        %s224 = smul.u32 2, %s27
        %v225 = vld [vmem:[%s184] sm:$0xff]
        %v226 = vld [vmem:[%s184 + $0x8] sm:$0xff]
        %v227 = vld [vmem:[%s184 + $0x10] sm:$0xff]
        %v228 = vld [vmem:[%s184 + $0x18] sm:$0xff]
        %v229 = vld [vmem:[%s184 + $0x20] sm:$0xff]
        %v230 = vld [vmem:[%s184 + $0x28] sm:$0xff]
        %v231 = vld [vmem:[%s184 + $0x30] sm:$0xff]
        %v232 = vld [vmem:[%s184 + $0x38] sm:$0xff]
        %v233 = vld [vmem:[%s194] sm:$0xff]
        %v234 = vld [vmem:[%s194 + $0x8] sm:$0xff]
        %v235 = vld [vmem:[%s194 + $0x10] sm:$0xff]
        %v236 = vld [vmem:[%s194 + $0x18] sm:$0xff]
        %v237 = vld [vmem:[%s194 + $0x20] sm:$0xff]
        %v238 = vld [vmem:[%s194 + $0x28] sm:$0xff]
        %v239 = vld [vmem:[%s194 + $0x30] sm:$0xff]
        %v240 = vld [vmem:[%s194 + $0x38] sm:$0xff]
        %v241 = vld [vmem:[%s194 + $0x40] sm:$0xff]
        %v242 = vld [vmem:[%s194 + $0x48] sm:$0xff]
        %v243 = vld [vmem:[%s194 + $0x50] sm:$0xff]
        %v244 = vld [vmem:[%s194 + $0x58] sm:$0xff]
        %v245 = vld [vmem:[%s194 + $0x60] sm:$0xff]
        %v246 = vld [vmem:[%s194 + $0x68] sm:$0xff]
        %v247 = vld [vmem:[%s194 + $0x70] sm:$0xff]
        %v248 = vld [vmem:[%s194 + $0x78] sm:$0xff]
        %v249 = vld [vmem:[%s194 + $0x80] sm:$0xff]
        %v250 = vld [vmem:[%s194 + $0x88] sm:$0xff]
        %v251 = vld [vmem:[%s194 + $0x90] sm:$0xff]
        %v252 = vld [vmem:[%s194 + $0x98] sm:$0xff]
        %v253 = vld [vmem:[%s194 + $0xa0] sm:$0xff]
        %v254 = vld [vmem:[%s194 + $0xa8] sm:$0xff]
        %v255 = vld [vmem:[%s194 + $0xb0] sm:$0xff]
        %v256 = vld [vmem:[%s194 + $0xb8] sm:$0xff]
        %v257 = vld [vmem:[%s194 + $0xc0] sm:$0xff]
        %v258 = vld [vmem:[%s194 + $0xc8] sm:$0xff]
        %v259 = vld [vmem:[%s194 + $0xd0] sm:$0xff]
        %v260 = vld [vmem:[%s194 + $0xd8] sm:$0xff]
        %v261 = vld [vmem:[%s194 + $0xe0] sm:$0xff]
        %v262 = vld [vmem:[%s194 + $0xe8] sm:$0xff]
        %v263 = vld [vmem:[%s194 + $0xf0] sm:$0xff]
        %v264 = vld [vmem:[%s194 + $0xf8] sm:$0xff]
        %v273 = vunpack.c.l.b16 %v225
        %v274 = vunpack.c.h.b16 %v225
        %v275 = vunpack.c.l.b16 %v226
        %v276 = vunpack.c.h.b16 %v226
        %v277 = vunpack.c.l.b16 %v227
        %v278 = vunpack.c.h.b16 %v227
        %v279 = vunpack.c.l.b16 %v228
        %v280 = vunpack.c.h.b16 %v228
        %v281 = vunpack.c.l.b16 %v229
        %v282 = vunpack.c.h.b16 %v229
        %v283 = vunpack.c.l.b16 %v230
        %v284 = vunpack.c.h.b16 %v230
        %v285 = vunpack.c.l.b16 %v231
        %v286 = vunpack.c.h.b16 %v231
        %v287 = vunpack.c.l.b16 %v232
        %v288 = vunpack.c.h.b16 %v232
        %v289 = vpack.c.b16 %v275, %v273
        %v290 = vpack.c.b16 %v276, %v274
        %v291 = vpack.c.b16 %v279, %v277
        %v292 = vpack.c.b16 %v280, %v278
        %v293 = vpack.c.b16 %v283, %v281
        %v294 = vpack.c.b16 %v284, %v282
        %v295 = vpack.c.b16 %v287, %v285
        %v296 = vpack.c.b16 %v288, %v286
        %v337 = vunpack.c.l.b16 %v233
        %v338 = vunpack.c.h.b16 %v233
        %v339 = vunpack.c.l.b16 %v234
        %v340 = vunpack.c.h.b16 %v234
        %v341 = vunpack.c.l.b16 %v235
        %v342 = vunpack.c.h.b16 %v235
        %v343 = vunpack.c.l.b16 %v236
        %v344 = vunpack.c.h.b16 %v236
        %v345 = vunpack.c.l.b16 %v237
        %v346 = vunpack.c.h.b16 %v237
        %v347 = vunpack.c.l.b16 %v238
        %v348 = vunpack.c.h.b16 %v238
        %v349 = vunpack.c.l.b16 %v239
        %v350 = vunpack.c.h.b16 %v239
        %v351 = vunpack.c.l.b16 %v240
        %v352 = vunpack.c.h.b16 %v240
        %v353 = vunpack.c.l.b16 %v241
        %v354 = vunpack.c.h.b16 %v241
        %v355 = vunpack.c.l.b16 %v242
        %v356 = vunpack.c.h.b16 %v242
        %v357 = vunpack.c.l.b16 %v243
        %v358 = vunpack.c.h.b16 %v243
        %v359 = vunpack.c.l.b16 %v244
        %v360 = vunpack.c.h.b16 %v244
        %v361 = vunpack.c.l.b16 %v245
        %v362 = vunpack.c.h.b16 %v245
        %v363 = vunpack.c.l.b16 %v246
        %v364 = vunpack.c.h.b16 %v246
        %v365 = vunpack.c.l.b16 %v247
        %v366 = vunpack.c.h.b16 %v247
        %v367 = vunpack.c.l.b16 %v248
        %v368 = vunpack.c.h.b16 %v248
        %v369 = vunpack.c.l.b16 %v249
        %v370 = vunpack.c.h.b16 %v249
        %v371 = vunpack.c.l.b16 %v250
        %v372 = vunpack.c.h.b16 %v250
        %v373 = vunpack.c.l.b16 %v251
        %v374 = vunpack.c.h.b16 %v251
        %v375 = vunpack.c.l.b16 %v252
        %v376 = vunpack.c.h.b16 %v252
        %v377 = vunpack.c.l.b16 %v253
        %v378 = vunpack.c.h.b16 %v253
        %v379 = vunpack.c.l.b16 %v254
        %v380 = vunpack.c.h.b16 %v254
        %v381 = vunpack.c.l.b16 %v255
        %v382 = vunpack.c.h.b16 %v255
        %v383 = vunpack.c.l.b16 %v256
        %v384 = vunpack.c.h.b16 %v256
        %v385 = vunpack.c.l.b16 %v257
        %v386 = vunpack.c.h.b16 %v257
        %v387 = vunpack.c.l.b16 %v258
        %v388 = vunpack.c.h.b16 %v258
        %v389 = vunpack.c.l.b16 %v259
        %v390 = vunpack.c.h.b16 %v259
        %v391 = vunpack.c.l.b16 %v260
        %v392 = vunpack.c.h.b16 %v260
        %v393 = vunpack.c.l.b16 %v261
        %v394 = vunpack.c.h.b16 %v261
        %v395 = vunpack.c.l.b16 %v262
        %v396 = vunpack.c.h.b16 %v262
        %v397 = vunpack.c.l.b16 %v263
        %v398 = vunpack.c.h.b16 %v263
        %v399 = vunpack.c.l.b16 %v264
        %v400 = vunpack.c.h.b16 %v264
        %v401 = vpack.c.b16 %v339, %v337
        %v402 = vpack.c.b16 %v340, %v338
        %v403 = vpack.c.b16 %v343, %v341
        %v404 = vpack.c.b16 %v344, %v342
        %v405 = vpack.c.b16 %v347, %v345
        %v406 = vpack.c.b16 %v348, %v346
        %v407 = vpack.c.b16 %v351, %v349
        %v408 = vpack.c.b16 %v352, %v350
        %v409 = vpack.c.b16 %v355, %v353
        %v410 = vpack.c.b16 %v356, %v354
        %v411 = vpack.c.b16 %v359, %v357
        %v412 = vpack.c.b16 %v360, %v358
        %v413 = vpack.c.b16 %v363, %v361
        %v414 = vpack.c.b16 %v364, %v362
        %v415 = vpack.c.b16 %v367, %v365
        %v416 = vpack.c.b16 %v368, %v366
        %v417 = vpack.c.b16 %v371, %v369
        %v418 = vpack.c.b16 %v372, %v370
        %v419 = vpack.c.b16 %v375, %v373
        %v420 = vpack.c.b16 %v376, %v374
        %v421 = vpack.c.b16 %v379, %v377
        %v422 = vpack.c.b16 %v380, %v378
        %v423 = vpack.c.b16 %v383, %v381
        %v424 = vpack.c.b16 %v384, %v382
        %v425 = vpack.c.b16 %v387, %v385
        %v426 = vpack.c.b16 %v388, %v386
        %v427 = vpack.c.b16 %v391, %v389
        %v428 = vpack.c.b16 %v392, %v390
        %v429 = vpack.c.b16 %v395, %v393
        %v430 = vpack.c.b16 %v396, %v394
        %v431 = vpack.c.b16 %v399, %v397
        %v432 = vpack.c.b16 %v400, %v398
        %465 = vmatpush.bf16.msra.mxu0 %v415
        %466 = vmatpush.bf16.msra.mxu0 %v413
        %467 = vmatpush.bf16.msra.mxu0 %v411
        %468 = vmatpush.bf16.msra.mxu0 %v409
        %469 = vmatpush.bf16.msra.mxu0 %v407
        %470 = vmatpush.bf16.msra.mxu0 %v405
        %471 = vmatpush.bf16.msra.mxu0 %v403
        %472 = vmatpush.bf16.msra.mxu0 %v401
        %473 = vmatmul.bf16.gmra.mxu0 %v289
        %v474 = vpop.f32.mrf.mxu0
        %v475 = vadd.f32 0.0, %v474
        %v476 = vpop.f32.mrf.mxu0
        %v477 = vadd.f32 0.0, %v476
        %478 = vmatmul.bf16.gmra.mxu0 %v291
        %v479 = vpop.f32.mrf.mxu0
        %v480 = vadd.f32 0.0, %v479
        %v481 = vpop.f32.mrf.mxu0
        %v482 = vadd.f32 0.0, %v481
        %483 = vmatmul.bf16.gmra.mxu0 %v293
        %v484 = vpop.f32.mrf.mxu0
        %v485 = vadd.f32 0.0, %v484
        %v486 = vpop.f32.mrf.mxu0
        %v487 = vadd.f32 0.0, %v486
        %488 = vmatmul.bf16.gmra.mxu0 %v295
        %v489 = vpop.f32.mrf.mxu0
        %v490 = vadd.f32 0.0, %v489
        %v491 = vpop.f32.mrf.mxu0
        %v492 = vadd.f32 0.0, %v491
        %493 = vdwg.mxu0
        %494 = vmatpush.bf16.msra.mxu0 %v431
        %495 = vmatpush.bf16.msra.mxu0 %v429
        %496 = vmatpush.bf16.msra.mxu0 %v427
        %497 = vmatpush.bf16.msra.mxu0 %v425
        %498 = vmatpush.bf16.msra.mxu0 %v423
        %499 = vmatpush.bf16.msra.mxu0 %v421
        %500 = vmatpush.bf16.msra.mxu0 %v419
        %501 = vmatpush.bf16.msra.mxu0 %v417
        %502 = vmatmul.bf16.gmra.mxu0 %v290
        %v503 = vpop.f32.mrf.mxu0
        %v504 = vadd.f32 %v475, %v503
        %v505 = vpop.f32.mrf.mxu0
        %v506 = vadd.f32 %v477, %v505
        %507 = vmatmul.bf16.gmra.mxu0 %v292
        %v508 = vpop.f32.mrf.mxu0
        %v509 = vadd.f32 %v480, %v508
        %v510 = vpop.f32.mrf.mxu0
        %v511 = vadd.f32 %v482, %v510
        %512 = vmatmul.bf16.gmra.mxu0 %v294
        %v513 = vpop.f32.mrf.mxu0
        %v514 = vadd.f32 %v485, %v513
        %v515 = vpop.f32.mrf.mxu0
        %v516 = vadd.f32 %v487, %v515
        %517 = vmatmul.bf16.gmra.mxu0 %v296
        %v518 = vpop.f32.mrf.mxu0
        %v519 = vadd.f32 %v490, %v518
        %v520 = vpop.f32.mrf.mxu0
        %v521 = vadd.f32 %v492, %v520
        %522 = vdwg.mxu0
        %523 = vmatpush.bf16.msra.mxu0 %v416
        %524 = vmatpush.bf16.msra.mxu0 %v414
        %525 = vmatpush.bf16.msra.mxu0 %v412
        %526 = vmatpush.bf16.msra.mxu0 %v410
        %527 = vmatpush.bf16.msra.mxu0 %v408
        %528 = vmatpush.bf16.msra.mxu0 %v406
        %529 = vmatpush.bf16.msra.mxu0 %v404
        %530 = vmatpush.bf16.msra.mxu0 %v402
        %531 = vmatmul.bf16.gmra.mxu0 %v289
        %v532 = vpop.f32.mrf.mxu0
        %v533 = vadd.f32 0.0, %v532
        %v534 = vpop.f32.mrf.mxu0
        %v535 = vadd.f32 0.0, %v534
        %536 = vmatmul.bf16.gmra.mxu0 %v291
        %v537 = vpop.f32.mrf.mxu0
        %v538 = vadd.f32 0.0, %v537
        %v539 = vpop.f32.mrf.mxu0
        %v540 = vadd.f32 0.0, %v539
        %541 = vmatmul.bf16.gmra.mxu0 %v293
        %v542 = vpop.f32.mrf.mxu0
        %v543 = vadd.f32 0.0, %v542
        %v544 = vpop.f32.mrf.mxu0
        %v545 = vadd.f32 0.0, %v544
        %546 = vmatmul.bf16.gmra.mxu0 %v295
        %v547 = vpop.f32.mrf.mxu0
        %v548 = vadd.f32 0.0, %v547
        %v549 = vpop.f32.mrf.mxu0
        %v550 = vadd.f32 0.0, %v549
        %551 = vdwg.mxu0
        %552 = vmatpush.bf16.msra.mxu0 %v432
        %553 = vmatpush.bf16.msra.mxu0 %v430
        %554 = vmatpush.bf16.msra.mxu0 %v428
        %555 = vmatpush.bf16.msra.mxu0 %v426
        %556 = vmatpush.bf16.msra.mxu0 %v424
        %557 = vmatpush.bf16.msra.mxu0 %v422
        %558 = vmatpush.bf16.msra.mxu0 %v420
        %559 = vmatpush.bf16.msra.mxu0 %v418
        %560 = vmatmul.bf16.gmra.mxu0 %v290
        %v561 = vpop.f32.mrf.mxu0
        %v562 = vadd.f32 %v533, %v561
        %v563 = vpop.f32.mrf.mxu0
        %v564 = vadd.f32 %v535, %v563
        %565 = vmatmul.bf16.gmra.mxu0 %v292
        %v566 = vpop.f32.mrf.mxu0
        %v567 = vadd.f32 %v538, %v566
        %v568 = vpop.f32.mrf.mxu0
        %v569 = vadd.f32 %v540, %v568
        %570 = vmatmul.bf16.gmra.mxu0 %v294
        %v571 = vpop.f32.mrf.mxu0
        %v572 = vadd.f32 %v543, %v571
        %v573 = vpop.f32.mrf.mxu0
        %v574 = vadd.f32 %v545, %v573
        %575 = vmatmul.bf16.gmra.mxu0 %v296
        %v576 = vpop.f32.mrf.mxu0
        %v577 = vadd.f32 %v548, %v576
        %v578 = vpop.f32.mrf.mxu0
        %v579 = vadd.f32 %v550, %v578
        %580 = vdwg.mxu0
        %v581 = vpack.c.bf16 %v562, %v504
        %v582 = vpack.c.bf16 %v564, %v506
        %v583 = vpack.c.bf16 %v567, %v509
        %v584 = vpack.c.bf16 %v569, %v511
        %v585 = vpack.c.bf16 %v572, %v514
        %v586 = vpack.c.bf16 %v574, %v516
        %v587 = vpack.c.bf16 %v577, %v519
        %v588 = vpack.c.bf16 %v579, %v521
        %589 = vst [vmem:[%s220] sm:$0xff] %v581
        %590 = vst [vmem:[%s220 + $0x8] sm:$0xff] %v582
        %591 = vst [vmem:[%s220 + $0x10] sm:$0xff] %v583
        %592 = vst [vmem:[%s220 + $0x18] sm:$0xff] %v584
        %593 = vst [vmem:[%s220 + $0x20] sm:$0xff] %v585
        %594 = vst [vmem:[%s220 + $0x28] sm:$0xff] %v586
        %595 = vst [vmem:[%s220 + $0x30] sm:$0xff] %v587
        %596 = vst [vmem:[%s220 + $0x38] sm:$0xff] %v588
        %s597 = sand.u32 %s96, 1
        %s598 = scalar_lea.sflag [#allocation4], %s597
        %s599 = sand.u32 %s96, 1
        %s600 = smul.addr %s599, 64
        %s601 = scalar_lea.vmem [#allocation7], %s600
        // Predicated region
        $region37: #{tpu_custom_call.1} parent=27 // pred_check
          %p602 = pneg %p106
        $region38: #{tpu_custom_call.1} parent=27 // pred_check_branch
          %604 = sbr.rel (%p602) target = $region40
        $region39: #{tpu_custom_call.1} parent=27 // pred_region
          %s605 = smul.u32 8, %s26
          %s606 = smul.u32 2, %s27
          %608 = vsyncadd %s598, 0
          %s609 = smul.addr %s605, 6
          %s610 = sadd.s32 %s606, %s609
          %s611 = smul.addr %s610, 4
          %s612 = scalar_lea.hbm %s2, %s611
          %s613 = sshll.u32 %s601, 4
          %s614 = int_to_ptr.vmem [resolvable:$true] %s613
          %s615 = sshll.u32 %s612, 4
          %s616 = int_to_ptr.hbm [resolvable:$true] %s615
          %621 = dma.vmem_to_hbm [thread:$0]  %s614, 1024, %s616, %s598, 128, 384, 8
        $region40: #{tpu_custom_call.1} parent=27 // pred_fallthru
          _
      $region28: #{tpu_custom_call.1} parent=5 // pred_fallthru
        _
      %p622 = scmp.le.s32.totalorder 2, %s17
      // Predicated region
      $region41: #{tpu_custom_call.1} parent=5 // pred_check
        %p623 = pneg %p622
      $region42: #{tpu_custom_call.1} parent=5 // pred_check_branch
        %625 = sbr.rel (%p623) target = $region44
      $region43: #{tpu_custom_call.1} parent=5 // pred_region
        %s626 = ssub.s32 %s17, 2
        // Predicated region
        $region45: #{tpu_custom_call.1} parent=43 // pred_check
          %p627 = pneg %p112
        $region46: #{tpu_custom_call.1} parent=43 // pred_check_branch
          %629 = sbr.rel (%p627) target = $region48
        $region47: #{tpu_custom_call.1} parent=43 // pred_region
          %s630 = sand.u32 %s97, 1
          %s631 = scalar_lea.sflag [#allocation4], %s630
          %s632 = sand.u32 %s97, 1
          %s633 = smul.addr %s632, 64
          %s634 = scalar_lea.vmem [#allocation7], %s633
          %636 = dma.done %s631, 1024
        $region48: #{tpu_custom_call.1} parent=43 // pred_fallthru
          _
      $region44: #{tpu_custom_call.1} parent=5 // pred_fallthru
        _
    $region6: #{tpu_custom_call.1} parent=1 // loop_footer
      %s21 = sadd.s32 1, %s17
    $region7: #{tpu_custom_call.1} parent=1 // loop_footer_branch
      %16 = sbr.rel target = $region3
    $region8: #{tpu_custom_call.1} parent=1 // loop_exit
      _
    %637 = vsyncpa [#allocation3], 1
    %s638 = scalar_lea.sflag [#allocation3], 1
    %639 = vsyncpa %s638, 1
    %640 = vsyncpa [#allocation6], 1
    %s641 = scalar_lea.sflag [#allocation6], 1
    %642 = vsyncpa %s641, 1
    %643 = vsyncpa [#allocation4], 1
    %s644 = scalar_lea.sflag [#allocation4], 1
    %645 = vsyncpa %s644, 1

</llo_original>
